<compile_context>
chip_gen: v5e
topology: v5e:2x2
jax: 0.10.0
libtpu: 0.0.40
codegen_flags: <defaults>
</compile_context>

<pallas_src>
import math

import jax
import jax.numpy as jnp
from jax import lax
from jax.experimental import pallas as pl
from jax.experimental.pallas import tpu as pltpu


def _round_up(v: int, m: int) -> int:
    return ((v + m - 1) // m) * m


def _sublane_multiple(dtype) -> int:
    itemsize = jnp.dtype(dtype).itemsize
    if itemsize >= 4:
        return 8
    if itemsize == 2:
        return 16
    return 32


def _make_single_k_kernel(hb: int, tk: int, in_features: int):
    """Whole K (IN) reduction in one step: no scratch, bias fused into store."""
    has_k_tail = (in_features % tk) != 0

    def kernel(x_ref, w_ref, b_ref, o_ref):
        for h in range(hb):  # static unroll over the blocked heads
            x = x_ref[0, h]
            w = w_ref[0, h]
            if has_k_tail:
                # Partial boundary block: lanes/rows >= IN hold unspecified
                # VMEM garbage.  Mask BOTH operands to exact zeros so possible
                # NaN/Inf garbage never reaches the MXU accumulation.
                xm = lax.broadcasted_iota(jnp.int32, x.shape, 1) < in_features
                wm = lax.broadcasted_iota(jnp.int32, w.shape, 0) < in_features
                x = jnp.where(xm, x, jnp.zeros_like(x))
                w = jnp.where(wm, w, jnp.zeros_like(w))
            acc = jnp.dot(x, w, preferred_element_type=jnp.float32)
            o_ref[0, h] = (acc + b_ref[0, h].astype(jnp.float32)).astype(o_ref.dtype)

    return kernel


def _make_multi_k_kernel(hb: int, tk: int, in_features: int):
    """K tiled over the innermost ('arbitrary') grid axis with f32 accumulator."""
    has_k_tail = (in_features % tk) != 0

    def kernel(x_ref, w_ref, b_ref, o_ref, acc_ref):
        k = pl.program_id(4)

        @pl.when(k == 0)
        def _init():
            # Seed the accumulator with the broadcast bias: bias-add is free
            # and the finalize step is a pure cast+store.
            for h in range(hb):
                acc_ref[h] = jnp.broadcast_to(
                    b_ref[0, h].astype(jnp.float32), acc_ref.shape[1:])

        k_base = k * tk
        for h in range(hb):
            x = x_ref[0, h]
            w = w_ref[0, h]
            if has_k_tail:
                xm = (lax.broadcasted_iota(jnp.int32, x.shape, 1) + k_base) < in_features
                wm = (lax.broadcasted_iota(jnp.int32, w.shape, 0) + k_base) < in_features
                x = jnp.where(xm, x, jnp.zeros_like(x))
                w = jnp.where(wm, w, jnp.zeros_like(w))
            acc_ref[h] += jnp.dot(x, w, preferred_element_type=jnp.float32)

        @pl.when(k == pl.num_programs(4) - 1)
        def _finalize():
            for h in range(hb):
                o_ref[0, h] = acc_ref[h].astype(o_ref.dtype)

    return kernel


def vectorized_linear_head(x, weight, bias, *, tm=512, tn=512, tk=1024,
                           hb=None, compute_dtype=None,
                           vmem_budget_bytes=20 * 1024 * 1024,
                           vmem_limit_bytes=32 * 1024 * 1024):
    """Pallas TPU VectorizedLinearHead forward.

    x:      (E, H, B, IN)
    weight: (E, H, IN, OUT)
    bias:   (E, H, 1, OUT)
    hb:     heads blocked per grid step (must divide H); auto-chosen if None.
    compute_dtype: optionally cast x/weight (e.g. jnp.bfloat16) for the
        memory-bound weight stream; accumulation and bias-add stay f32.
    returns (E, H, B, OUT) in x's original dtype.
    """
    E, H, B, IN = x.shape
    OUT = weight.shape[-1]
    out_dtype = x.dtype

    if compute_dtype is not None:
        x = x.astype(compute_dtype)
        weight = weight.astype(compute_dtype)

    # Tile sizes: clamp to the (aligned) problem size.  Sublane axis (M)
    # rounds to the output-dtype packing; lane axes (N, K) to multiples of 128
    # (aligned MXU tiles; partial boundary blocks handle ragged tails).
    sub = _sublane_multiple(out_dtype)
    tm = min(tm, _round_up(B, sub))
    tn = min(tn, _round_up(OUT, 128))
    tk = min(tk, _round_up(IN, 128))

    nm = pl.cdiv(B, tm)
    nn = pl.cdiv(OUT, tn)
    nk = pl.cdiv(IN, tk)

    # --- choose how many heads to block per grid step --------------------
    xb = jnp.dtype(x.dtype).itemsize
    wb = jnp.dtype(weight.dtype).itemsize
    bb = jnp.dtype(bias.dtype).itemsize
    ob = jnp.dtype(out_dtype).itemsize

    def _vmem_estimate(d):
        in_bufs = d * (tm * tk * xb + tk * tn * wb + tn * bb)
        out_bufs = d * tm * tn * ob
        acc = d * tm * tn * 4 if nk > 1 else 0
        return 2 * (in_bufs + out_bufs) + acc  # double-buffered in/out + scratch

    if hb is None:
        target_w_bytes = 4 * 1024 * 1024  # ~4 MiB weight per step amortizes overhead
        hb = 1
        for d in range(1, H + 1):
            if H % d:
                continue
            if _vmem_estimate(d) > vmem_budget_bytes:
                break
            hb = d
            if d * tk * tn * wb >= target_w_bytes:
                break
    else:
        if H % hb != 0:
            raise ValueError(f"hb={hb} must divide num_heads={H}")

    # --- grid / specs -----------------------------------------------------
    # K is innermost + "arbitrary" (accumulator correctness depends on it).
    grid = (E, H // hb, nn, nm, nk)

    in_specs = [
        # x tile: depends on (m, k) only.
        pl.BlockSpec((1, hb, tm, tk), lambda e, hg, n, m, k: (e, hg, m, k)),
        # weight tile: independent of m -> when nk == 1 its DMA is skipped and
        # the block is reused across consecutive m steps (dominant HBM term).
        pl.BlockSpec((1, hb, tk, tn), lambda e, hg, n, m, k: (e, hg, k, n)),
        # bias tile: independent of m and k.
        pl.BlockSpec((1, hb, 1, tn), lambda e, hg, n, m, k: (e, hg, 0, n)),
    ]
    out_spec = pl.BlockSpec((1, hb, tm, tn), lambda e, hg, n, m, k: (e, hg, m, n))

    if nk == 1:
        kernel = _make_single_k_kernel(hb, tk, IN)
        scratch_shapes = []
    else:
        kernel = _make_multi_k_kernel(hb, tk, IN)
        scratch_shapes = [pltpu.VMEM((hb, tm, tn), jnp.float32)]

    out = pl.pallas_call(
        kernel,
        out_shape=jax.ShapeDtypeStruct((E, H, B, OUT), out_dtype),
        grid_spec=pltpu.PrefetchScalarGridSpec(
            num_scalar_prefetch=0,
            grid=grid,
            in_specs=in_specs,
            out_specs=out_spec,
            scratch_shapes=scratch_shapes,
        ),
        compiler_params=pltpu.CompilerParams(
            dimension_semantics=(
                "parallel", "parallel", "parallel", "parallel", "arbitrary",
            ),
            vmem_limit_bytes=vmem_limit_bytes,
        ),
    )(x, weight, bias)

    return out


def init_params(key, in_features, out_features, ensemble_size, num_heads,
                dtype=jnp.float32):
    """Uniform(-stdv, stdv) init, mirroring reset_parameters()."""
    stdv = 1.0 / math.sqrt(in_features)
    k_w, k_b = jax.random.split(key)
    weight = jax.random.uniform(
        k_w, (ensemble_size, num_heads, in_features, out_features),
        minval=-stdv, maxval=stdv, dtype=dtype)
    bias = jax.random.uniform(
        k_b, (ensemble_size, num_heads, 1, out_features),
        minval=-stdv, maxval=stdv, dtype=dtype)
    return weight, bias


if __name__ == "__main__":
    key = jax.random.PRNGKey(0)
    k_x1, k_p1, k_x2, k_p2 = jax.random.split(key, 4)

    # ---- Test 1: module-sized example (E=3, H=2, B=8, IN=32, OUT=16) ----
    # Exercises the single-K no-scratch kernel, K-tail masking (IN=32 < 128),
    # N/M ragged output blocks and head blocking (hb=2).
    E, H, B, IN, OUT = 3, 2, 8, 32, 16
    x = jax.random.normal(k_x1, (E, H, B, IN), dtype=jnp.float32)
    weight, bias = init_params(k_p1, IN, OUT, E, H)
    ref = jnp.matmul(x, weight) + bias

    out = jax.block_until_ready(vectorized_linear_head(x, weight, bias))
    assert out.shape == (E, H, B, OUT)
    assert jnp.allclose(out, ref, atol=1e-5, rtol=1e-5)

    # bf16 streaming path (halves weight HBM traffic; f32 accumulation).
    out_bf16 = jax.block_until_ready(
        vectorized_linear_head(x, weight, bias, compute_dtype=jnp.bfloat16))
    assert out_bf16.shape == (E, H, B, OUT)
    assert jnp.allclose(out_bf16, ref, atol=5e-2, rtol=5e-2)

    # ---- Test 2: multi-K accumulator path with ragged tails everywhere ----
    # tk=128 forces nk=3 (IN=300 -> K tail 44); B=20 (M tail), OUT=70 (N tail);
    # hb auto-selects 3.
    E2, H2, B2, IN2, OUT2 = 2, 3, 20, 300, 70
    x2 = jax.random.normal(k_x2, (E2, H2, B2, IN2), dtype=jnp.float32)
    w2, b2 = init_params(k_p2, IN2, OUT2, E2, H2)
    ref2 = jnp.matmul(x2, w2) + b2

    out2 = jax.block_until_ready(
        vectorized_linear_head(x2, w2, b2, tk=128))
    assert out2.shape == (E2, H2, B2, OUT2)
    assert jnp.allclose(out2, ref2, atol=1e-3, rtol=1e-3)

    print("KERNEL_OK")
</pallas_src>

<mosaic_0001>
module attributes {stable_mosaic.version = 11 : i64} {
  func.func @kernel(%arg0: i32, %arg1: i32, %arg2: i32, %arg3: i32, %arg4: i32, %arg5: memref<1x2x8x128xf32, #tpu.memory_space<vmem>>, %arg6: memref<1x2x128x128xf32, #tpu.memory_space<vmem>>, %arg7: memref<1x2x1x128xf32, #tpu.memory_space<vmem>>, %arg8: memref<1x2x8x128xf32, #tpu.memory_space<vmem>>) attributes {dimension_semantics = [#tpu.dimension_semantics<parallel>, #tpu.dimension_semantics<parallel>, #tpu.dimension_semantics<parallel>, #tpu.dimension_semantics<parallel>, #tpu.dimension_semantics<arbitrary>], iteration_bounds = array<i64: 3, 1, 1, 1, 1>, scalar_prefetch = 0 : i64, scratch_operands = 0 : i64, tpu.core_type = #tpu.core_type<tc>, window_params = [{transform_indices = @transform_0, window_bounds = array<i64: 1, 2, 8, 128>}, {transform_indices = @transform_1, window_bounds = array<i64: 1, 2, 128, 128>}, {transform_indices = @transform_2, window_bounds = array<i64: 1, 2, 1, 128>}, {transform_indices = @transform_3, window_bounds = array<i64: 1, 2, 8, 128>}]} {
    %c0 = arith.constant 0 : index
    %c0_0 = arith.constant 0 : index
    %c0_1 = arith.constant 0 : index
    %c0_2 = arith.constant 0 : index
    %0 = vector.load %arg5[%c0, %c0_0, %c0_1, %c0_2] : memref<1x2x8x128xf32, #tpu.memory_space<vmem>>, vector<1x1x8x128xf32>
    %1 = vector.shape_cast %0 : vector<1x1x8x128xf32> to vector<8x128xf32>
    %c0_3 = arith.constant 0 : index
    %c0_4 = arith.constant 0 : index
    %c0_5 = arith.constant 0 : index
    %c0_6 = arith.constant 0 : index
    %2 = vector.load %arg6[%c0_3, %c0_4, %c0_5, %c0_6] : memref<1x2x128x128xf32, #tpu.memory_space<vmem>>, vector<1x1x128x128xf32>
    %3 = vector.shape_cast %2 : vector<1x1x128x128xf32> to vector<128x128xf32>
    %4 = tpu.iota {dimensions = array<i32: 1>} : vector<8x128xi32>
    %c32_i32 = arith.constant 32 : i32
    %5 = vector.broadcast %c32_i32 : i32 to vector<8x128xi32>
    %6 = arith.cmpi slt, %4, %5 : vector<8x128xi32>
    %7 = tpu.iota {dimensions = array<i32: 0>} : vector<128x128xi32>
    %c32_i32_7 = arith.constant 32 : i32
    %8 = vector.broadcast %c32_i32_7 : i32 to vector<128x128xi32>
    %9 = arith.cmpi slt, %7, %8 : vector<128x128xi32>
    %cst = arith.constant 0.000000e+00 : f32
    %10 = vector.broadcast %cst : f32 to vector<8x128xf32>
    %11 = arith.select %6, %1, %10 : vector<8x128xi1>, vector<8x128xf32>
    %cst_8 = arith.constant 0.000000e+00 : f32
    %12 = vector.broadcast %cst_8 : f32 to vector<128x128xf32>
    %13 = arith.select %9, %3, %12 : vector<128x128xi1>, vector<128x128xf32>
    %cst_9 = arith.constant dense<0.000000e+00> : vector<8x128xf32>
    %14 = tpu.matmul %11, %13, %cst_9 {dimension_numbers = #tpu.dot_dimension_numbers<[1], [0], [0], [1], [0, 0, 1, 1], [], []>} : vector<8x128xf32>, vector<128x128xf32>, vector<8x128xf32> -> vector<8x128xf32>
    %c0_10 = arith.constant 0 : index
    %c0_11 = arith.constant 0 : index
    %c0_12 = arith.constant 0 : index
    %c0_13 = arith.constant 0 : index
    %15 = vector.load %arg7[%c0_10, %c0_11, %c0_12, %c0_13] : memref<1x2x1x128xf32, #tpu.memory_space<vmem>>, vector<1x1x1x128xf32>
    %16 = vector.shape_cast %15 : vector<1x1x1x128xf32> to vector<1x128xf32>
    %17 = vector.broadcast %16 : vector<1x128xf32> to vector<8x128xf32>
    %18 = arith.addf %14, %17 : vector<8x128xf32>
    %c0_14 = arith.constant 0 : index
    %c0_15 = arith.constant 0 : index
    %c0_16 = arith.constant 0 : index
    %c0_17 = arith.constant 0 : index
    %19 = vector.load %arg8[%c0_14, %c0_15, %c0_16, %c0_17] : memref<1x2x8x128xf32, #tpu.memory_space<vmem>>, vector<1x1x8x128xf32>
    %20 = vector.shape_cast %19 : vector<1x1x8x128xf32> to vector<8x128xf32>
    %21 = vector.shape_cast %18 : vector<8x128xf32> to vector<1x1x8x128xf32>
    tpu.vector_store %arg8[%c0_14, %c0_15, %c0_16, %c0_17], %21 {strides = array<i32>} : memref<1x2x8x128xf32, #tpu.memory_space<vmem>>, vector<1x1x8x128xf32>,
    %c0_18 = arith.constant 0 : index
    %c1 = arith.constant 1 : index
    %c0_19 = arith.constant 0 : index
    %c0_20 = arith.constant 0 : index
    %22 = vector.load %arg5[%c0_18, %c1, %c0_19, %c0_20] : memref<1x2x8x128xf32, #tpu.memory_space<vmem>>, vector<1x1x8x128xf32>
    %23 = vector.shape_cast %22 : vector<1x1x8x128xf32> to vector<8x128xf32>
    %c0_21 = arith.constant 0 : index
    %c1_22 = arith.constant 1 : index
    %c0_23 = arith.constant 0 : index
    %c0_24 = arith.constant 0 : index
    %24 = vector.load %arg6[%c0_21, %c1_22, %c0_23, %c0_24] : memref<1x2x128x128xf32, #tpu.memory_space<vmem>>, vector<1x1x128x128xf32>
    %25 = vector.shape_cast %24 : vector<1x1x128x128xf32> to vector<128x128xf32>
    %26 = tpu.iota {dimensions = array<i32: 1>} : vector<8x128xi32>
    %c32_i32_25 = arith.constant 32 : i32
    %27 = vector.broadcast %c32_i32_25 : i32 to vector<8x128xi32>
    %28 = arith.cmpi slt, %26, %27 : vector<8x128xi32>
    %29 = tpu.iota {dimensions = array<i32: 0>} : vector<128x128xi32>
    %c32_i32_26 = arith.constant 32 : i32
    %30 = vector.broadcast %c32_i32_26 : i32 to vector<128x128xi32>
    %31 = arith.cmpi slt, %29, %30 : vector<128x128xi32>
    %cst_27 = arith.constant 0.000000e+00 : f32
    %32 = vector.broadcast %cst_27 : f32 to vector<8x128xf32>
    %33 = arith.select %28, %23, %32 : vector<8x128xi1>, vector<8x128xf32>
    %cst_28 = arith.constant 0.000000e+00 : f32
    %34 = vector.broadcast %cst_28 : f32 to vector<128x128xf32>
    %35 = arith.select %31, %25, %34 : vector<128x128xi1>, vector<128x128xf32>
    %cst_29 = arith.constant dense<0.000000e+00> : vector<8x128xf32>
    %36 = tpu.matmul %33, %35, %cst_29 {dimension_numbers = #tpu.dot_dimension_numbers<[1], [0], [0], [1], [0, 0, 1, 1], [], []>} : vector<8x128xf32>, vector<128x128xf32>, vector<8x128xf32> -> vector<8x128xf32>
    %c0_30 = arith.constant 0 : index
    %c1_31 = arith.constant 1 : index
    %c0_32 = arith.constant 0 : index
    %c0_33 = arith.constant 0 : index
    %37 = vector.load %arg7[%c0_30, %c1_31, %c0_32, %c0_33] : memref<1x2x1x128xf32, #tpu.memory_space<vmem>>, vector<1x1x1x128xf32>
    %38 = vector.shape_cast %37 : vector<1x1x1x128xf32> to vector<1x128xf32>
    %39 = vector.broadcast %38 : vector<1x128xf32> to vector<8x128xf32>
    %40 = arith.addf %36, %39 : vector<8x128xf32>
    %c0_34 = arith.constant 0 : index
    %c1_35 = arith.constant 1 : index
    %c0_36 = arith.constant 0 : index
    %c0_37 = arith.constant 0 : index
    %41 = vector.load %arg8[%c0_34, %c1_35, %c0_36, %c0_37] : memref<1x2x8x128xf32, #tpu.memory_space<vmem>>, vector<1x1x8x128xf32>
    %42 = vector.shape_cast %41 : vector<1x1x8x128xf32> to vector<8x128xf32>
    %43 = vector.shape_cast %40 : vector<8x128xf32> to vector<1x1x8x128xf32>
    tpu.vector_store %arg8[%c0_34, %c1_35, %c0_36, %c0_37], %43 {strides = array<i32>} : memref<1x2x8x128xf32, #tpu.memory_space<vmem>>, vector<1x1x8x128xf32>,
    return
  }
  func.func @transform_0(%arg0: i32, %arg1: i32, %arg2: i32, %arg3: i32, %arg4: i32) -> (i32, i32, i32, i32) {
    %c0_i32 = arith.constant 0 : i32
    return %arg0, %arg1, %arg3, %arg4 : i32, i32, i32, i32
  }
  func.func @transform_1(%arg0: i32, %arg1: i32, %arg2: i32, %arg3: i32, %arg4: i32) -> (i32, i32, i32, i32) {
    %c0_i32 = arith.constant 0 : i32
    return %arg0, %arg1, %arg4, %arg2 : i32, i32, i32, i32
  }
  func.func @transform_2(%arg0: i32, %arg1: i32, %arg2: i32, %arg3: i32, %arg4: i32) -> (i32, i32, i32, i32) {
    %c0_i32 = arith.constant 0 : i32
    %c0_i32_0 = arith.constant 0 : i32
    return %arg0, %arg1, %c0_i32, %arg2 : i32, i32, i32, i32
  }
  func.func @transform_3(%arg0: i32, %arg1: i32, %arg2: i32, %arg3: i32, %arg4: i32) -> (i32, i32, i32, i32) {
    %c0_i32 = arith.constant 0 : i32
    return %arg0, %arg1, %arg3, %arg2 : i32, i32, i32, i32
  }
}

</mosaic_0001>

<llo_original>
// kernel: tpu_custom_call.1
$region0: #{tpu_custom_call.1}
  #allocation0 [shape = 'u32[]', space=smem, size = 0x4, offset = 0x4, fixed_abs, tag = 'smem constant byte address 0x4 - core index']
  #allocation1 [shape = 'u32[72,128]{1,0:T(1,128)}', space=vmem, size = 0x9000, scoped, tag = 'internal scratch']
  %s0 = inlined_call_operand.vmem [shape: f32[3,2,8,32], index: 0, kind: input, shape index: {}]
  %s1 = inlined_call_operand.vmem [shape: f32[3,2,32,16], index: 1, kind: input, shape index: {}]
  %s2 = inlined_call_operand.vmem [shape: f32[3,2,1,16], index: 2, kind: input, shape index: {}]
  %s3 = inlined_call_operand.hbm [shape: f32[3,2,8,16], index: 3, kind: output, shape index: {}]
  %s4 = sld [smem:[#allocation0]]
  $region97: #{tpu_custom_call.1} parent=0
    _
  %s6 = ssub.s32 1, %s4
  %s7 = scalar_select 0, %s6, %s4
  $region1: #{tpu_custom_call.1} parent=0
    #allocation2 [shape = 'u8[262144]{0}', space=vmem, size = 0x40000, scoped, tag = 'input window, operand 1']
    #allocation3 [shape = 'u8[16384]{0}', space=vmem, size = 0x4000, scoped, tag = 'output window, operand 0']
    #allocation4 [shape = 's32[2]{0}', space=sflag, size = 0x8, scoped, tag = 'scoped memory for tpu_custom_call.1']
    %8 = vsyncpa [#allocation4], 0
    %s9 = scalar_lea.sflag [#allocation4], 1
    %10 = vsyncpa %s9, 0
    loop: start=0, step=1, limit=5
    $region2: #{tpu_custom_call.1} parent=1 // loop_pre_header
      _
    $region3: #{tpu_custom_call.1} parent=1 // loop_header
      %s12 = sphi 0, %s16
      %p13 = scmp.ge.s32.totalorder %s12, 5
      %s19 = sphi 0, %s52
      %s20 = sphi 0, %s48
      %s21 = sphi 0, %s44
      %s22 = sphi 0, %s40
      %s23 = sphi 0, %s36
      %s24 = sphi 0, %s19
      %s25 = sphi 0, %s20
      %s26 = sphi 0, %s21
      %s27 = sphi 0, %s22
      %s28 = sphi 0, %s23
      %s29 = sphi 0, %s24
      %s30 = sphi 0, %s25
      %s31 = sphi 0, %s26
      %s32 = sphi 0, %s27
      %s33 = sphi 0, %s28
      %s61 = sphi 0, %s63
      %s64 = sphi 0, %s61
      %s65 = sphi 0, %s64
      %s81 = sphi 0, %s65
      %s93 = sphi 0, %s95
      %s96 = sphi 0, %s93
      %s97 = sphi 0, %s96
      %s113 = sphi 0, %s97
      %s123 = sphi 0, %s125
      %s126 = sphi 0, %s123
      %s127 = sphi 0, %s126
      %s143 = sphi 0, %s127
      %s155 = sphi 0, %s157
      %s158 = sphi 0, %s155
      %s159 = sphi 0, %s158
      %s175 = sphi 0, %s159
    $region4: #{tpu_custom_call.1} parent=1 // loop_header_branch
      %15 = sbr.rel (%p13) target = $region8
    $region5: #{tpu_custom_call.1} parent=1 // loop_body
      %s17 = ssub.s32 %s12, 1
      %s18 = ssub.s32 %s12, 2
      %s34 = sadd.s32 1, %s23
      %p35 = scmp.ge.s32.totalorder %s34, 1
      %s36 = scalar_select %p35, 0, %s34
      %s37 = sadd.s32 1, %s22
      %s38 = scalar_select %p35, %s37, %s22
      %p39 = scmp.ge.s32.totalorder %s38, 1
      %s40 = scalar_select %p39, 0, %s38
      %s41 = sadd.s32 1, %s21
      %s42 = scalar_select %p39, %s41, %s21
      %p43 = scmp.ge.s32.totalorder %s42, 1
      %s44 = scalar_select %p43, 0, %s42
      %s45 = sadd.s32 1, %s20
      %s46 = scalar_select %p43, %s45, %s20
      %p47 = scmp.ge.s32.totalorder %s46, 1
      %s48 = scalar_select %p47, 0, %s46
      %s49 = sadd.s32 1, %s19
      %s50 = scalar_select %p47, %s49, %s19
      %p51 = scmp.ge.s32.totalorder %s50, 3
      %s52 = scalar_select %p51, 0, %s50
      %s53 = ssub.s32 %s19, %s52
      %s54 = ssub.s32 %s20, %s48
      %s55 = sor.u32 %s53, %s54
      %s56 = ssub.s32 %s22, %s40
      %s57 = sor.u32 %s55, %s56
      %s58 = ssub.s32 %s23, %s36
      %s59 = sor.u32 %s57, %s58
      %p60 = scmp.eq.s32.totalorder %s59, 0
      %s62 = sadd.s32 %s61, 1
      %s63 = scalar_select %p60, %s61, %s62
      %p66 = pneg %p60
      %p67 = scmp.eq.s32.totalorder %s12, 2
      %p68 = por %p66, %p67
      %p69 = scmp.ne.s32.totalorder %s61, %s64
      %p70 = scmp.eq.s32.totalorder %s12, 0
      %p71 = por %p69, %p70
      %p72 = scmp.ne.s32.totalorder %s61, %s64
      %p73 = scmp.eq.s32.totalorder %s17, 2
      %p74 = por %p72, %p73
      %p75 = scmp.ne.s32.totalorder %s64, %s65
      %p76 = scmp.eq.s32.totalorder %s17, 0
      %p77 = por %p75, %p76
      %p78 = scmp.ne.s32.totalorder %s64, %s65
      %p79 = scmp.eq.s32.totalorder %s18, 2
      %p80 = por %p78, %p79
      %p82 = scmp.ne.s32.totalorder %s65, %s81
      %p83 = scmp.eq.s32.totalorder %s18, 0
      %p84 = por %p82, %p83
      %s85 = ssub.s32 %s19, %s52
      %s86 = ssub.s32 %s20, %s48
      %s87 = sor.u32 %s85, %s86
      %s88 = ssub.s32 %s23, %s36
      %s89 = sor.u32 %s87, %s88
      %s90 = ssub.s32 %s21, %s44
      %s91 = sor.u32 %s89, %s90
      %p92 = scmp.eq.s32.totalorder %s91, 0
      %s94 = sadd.s32 %s93, 1
      %s95 = scalar_select %p92, %s93, %s94
      %p98 = pneg %p92
      %p99 = scmp.eq.s32.totalorder %s12, 2
      %p100 = por %p98, %p99
      %p101 = scmp.ne.s32.totalorder %s93, %s96
      %p102 = scmp.eq.s32.totalorder %s12, 0
      %p103 = por %p101, %p102
      %p104 = scmp.ne.s32.totalorder %s93, %s96
      %p105 = scmp.eq.s32.totalorder %s17, 2
      %p106 = por %p104, %p105
      %p107 = scmp.ne.s32.totalorder %s96, %s97
      %p108 = scmp.eq.s32.totalorder %s17, 0
      %p109 = por %p107, %p108
      %p110 = scmp.ne.s32.totalorder %s96, %s97
      %p111 = scmp.eq.s32.totalorder %s18, 2
      %p112 = por %p110, %p111
      %p114 = scmp.ne.s32.totalorder %s97, %s113
      %p115 = scmp.eq.s32.totalorder %s18, 0
      %p116 = por %p114, %p115
      %s117 = ssub.s32 %s19, %s52
      %s118 = ssub.s32 %s20, %s48
      %s119 = sor.u32 %s117, %s118
      %s120 = ssub.s32 %s21, %s44
      %s121 = sor.u32 %s119, %s120
      %p122 = scmp.eq.s32.totalorder %s121, 0
      %s124 = sadd.s32 %s123, 1
      %s125 = scalar_select %p122, %s123, %s124
      %p128 = pneg %p122
      %p129 = scmp.eq.s32.totalorder %s12, 2
      %p130 = por %p128, %p129
      %p131 = scmp.ne.s32.totalorder %s123, %s126
      %p132 = scmp.eq.s32.totalorder %s12, 0
      %p133 = por %p131, %p132
      %p134 = scmp.ne.s32.totalorder %s123, %s126
      %p135 = scmp.eq.s32.totalorder %s17, 2
      %p136 = por %p134, %p135
      %p137 = scmp.ne.s32.totalorder %s126, %s127
      %p138 = scmp.eq.s32.totalorder %s17, 0
      %p139 = por %p137, %p138
      %p140 = scmp.ne.s32.totalorder %s126, %s127
      %p141 = scmp.eq.s32.totalorder %s18, 2
      %p142 = por %p140, %p141
      %p144 = scmp.ne.s32.totalorder %s127, %s143
      %p145 = scmp.eq.s32.totalorder %s18, 0
      %p146 = por %p144, %p145
      %s147 = ssub.s32 %s19, %s52
      %s148 = ssub.s32 %s20, %s48
      %s149 = sor.u32 %s147, %s148
      %s150 = ssub.s32 %s22, %s40
      %s151 = sor.u32 %s149, %s150
      %s152 = ssub.s32 %s21, %s44
      %s153 = sor.u32 %s151, %s152
      %p154 = scmp.eq.s32.totalorder %s153, 0
      %s156 = sadd.s32 %s155, 1
      %s157 = scalar_select %p154, %s155, %s156
      %p160 = pneg %p154
      %p161 = scmp.eq.s32.totalorder %s12, 2
      %p162 = por %p160, %p161
      %p163 = scmp.ne.s32.totalorder %s155, %s158
      %p164 = scmp.eq.s32.totalorder %s12, 0
      %p165 = por %p163, %p164
      %p166 = scmp.ne.s32.totalorder %s155, %s158
      %p167 = scmp.eq.s32.totalorder %s17, 2
      %p168 = por %p166, %p167
      %p169 = scmp.ne.s32.totalorder %s158, %s159
      %p170 = scmp.eq.s32.totalorder %s17, 0
      %p171 = por %p169, %p170
      %p172 = scmp.ne.s32.totalorder %s158, %s159
      %p173 = scmp.eq.s32.totalorder %s18, 2
      %p174 = por %p172, %p173
      %p176 = scmp.ne.s32.totalorder %s159, %s175
      %p177 = scmp.eq.s32.totalorder %s18, 0
      %p178 = por %p176, %p177
      %p179 = scmp.le.s32.totalorder 1, %s12
      %p180 = scmp.lt.s32.totalorder %s12, 4
      %p181 = pnand %p179, %p180
      %p182 = pneg %p181
      // Predicated region
      $region9: #{tpu_custom_call.1} parent=5 // pred_check
        _
      $region10: #{tpu_custom_call.1} parent=5 // pred_check_branch
        %184 = sbr.rel (%p181) target = $region12
      $region11: #{tpu_custom_call.1} parent=5 // pred_region
        %s185 = ssub.s32 %s12, 1
      $region12: #{tpu_custom_call.1} parent=5 // pred_fallthru
        _
      %p186 = scmp.lt.s32.totalorder %s12, 3
      // Predicated region
      $region13: #{tpu_custom_call.1} parent=5 // pred_check
        %p187 = pneg %p186
      $region14: #{tpu_custom_call.1} parent=5 // pred_check_branch
        %189 = sbr.rel (%p187) target = $region16
      $region15: #{tpu_custom_call.1} parent=5 // pred_region
        // Predicated region
        $region17: #{tpu_custom_call.1} parent=15 // pred_check
          %p190 = pneg %p71
        $region18: #{tpu_custom_call.1} parent=15 // pred_check_branch
          %192 = sbr.rel (%p190) target = $region20
        $region19: #{tpu_custom_call.1} parent=15 // pred_region
          %s193 = smul.u32 2, %s20
          %p194 = scmp.lt.s32.totalorder %s19, 2
          %s195 = scalar_select %p194, %s19, 2
          %p196 = scmp.lt.s32.totalorder %s193, 1
          %s197 = scalar_select %p196, %s193, 1
          %p198 = scmp.lt.s32.totalorder %s22, 0
          %s199 = scalar_select %p198, %s22, 0
          %p200 = scmp.lt.s32.totalorder %s23, 0
          %s201 = scalar_select %p200, %s23, 0
          %s202 = sadd.s32 %s201, %s199
          %s203 = sadd.s32 %s202, %s197
          %s204 = smul.addr %s195, 2
          %s205 = sadd.s32 %s203, %s204
          %s206 = smul.addr %s205, 8
          %s207 = scalar_lea.vmem %s0, %s206
          %s208 = smul.u32 2, %s20
        $region20: #{tpu_custom_call.1} parent=15 // pred_fallthru
          _
        // Predicated region
        $region21: #{tpu_custom_call.1} parent=15 // pred_check
          %p209 = pneg %p103
        $region22: #{tpu_custom_call.1} parent=15 // pred_check_branch
          %211 = sbr.rel (%p209) target = $region24
        $region23: #{tpu_custom_call.1} parent=15 // pred_region
          %s212 = sand.u32 %s93, 1
          %s213 = sand.u32 %s93, 1
          %s214 = smul.addr %s213, 256
          %s215 = scalar_lea.vmem [#allocation2], %s214
          %s216 = smul.u32 2, %s20
          %s217 = smul.u32 16, %s23
          %s218 = ssub.s32 4, %s217
          %s219 = smul.u32 16, %s218
          %p220 = scmp.ne.s32.totalorder 0, %s219
          %s221 = sadd.s32 %s21, %s217
          %s222 = smul.addr %s216, 4
          %s223 = sadd.s32 %s221, %s222
          %s224 = smul.addr %s19, 8
          %s225 = sadd.s32 %s223, %s224
          %s226 = smul.addr %s225, 8
          %s227 = scalar_lea.vmem %s1, %s226
          // Predicated region
          $region25: #{tpu_custom_call.1} parent=23 // pred_check
            %p228 = pneg %p220
          $region26: #{tpu_custom_call.1} parent=23 // pred_check_branch
            %230 = sbr.rel (%p228) target = $region28
          $region27: #{tpu_custom_call.1} parent=23 // pred_region
            // Predicated region
            $region29: #{tpu_custom_call.1} parent=27 // pred_check
              _
            $region30: #{tpu_custom_call.1} parent=27 // pred_check_branch
              %232 = sbr.rel (0) target = $region32
            $region31: #{tpu_custom_call.1} parent=27 // pred_region
              // Predicated region
              $region51: #{tpu_custom_call.1} parent=31 // pred_check
                _
              $region52: #{tpu_custom_call.1} parent=31 // pred_check_branch
                %298 = sbr.rel (0) target = $region54
              $region53: #{tpu_custom_call.1} parent=31 // pred_region
                %s299 = sshrl.u32 %s218, 2
                // While loop
                $region55: #{tpu_custom_call.1} parent=53 // loop_pre_header
                  _
                $region56: #{tpu_custom_call.1} parent=53 // loop_header
                  %s301 = sphi 0, %s303
                  %p302 = scmp.ge.s32.totalorder %s301, %s299
                  %s306 = sphi 0, %s327
                  %s307 = sphi %s227, %s330
                  %s308 = sphi %s215, %s331
                $region57: #{tpu_custom_call.1} parent=53 // loop_header_branch
                  %305 = sbr.rel (%p302) target = $region61
                $region58: #{tpu_custom_call.1} parent=53 // loop_body
                  %v309 = vld [vmem:[%s307] sm:$0xff]
                  %310 = vst [vmem:[%s308] sm:$0xff] %v309
                  %v311 = vld [vmem:[%s307 + $0x8] sm:$0xff]
                  %312 = vst [vmem:[%s308 + $0x8] sm:$0xff] %v311
                  %v313 = vld [vmem:[%s307 + $0x10] sm:$0xff]
                  %314 = vst [vmem:[%s308 + $0x10] sm:$0xff] %v313
                  %v315 = vld [vmem:[%s307 + $0x18] sm:$0xff]
                  %316 = vst [vmem:[%s308 + $0x18] sm:$0xff] %v315
                  %v317 = vld [vmem:[%s307 + $0x20] sm:$0xff]
                  %318 = vst [vmem:[%s308 + $0x80] sm:$0xff] %v317
                  %v319 = vld [vmem:[%s307 + $0x28] sm:$0xff]
                  %320 = vst [vmem:[%s308 + $0x88] sm:$0xff] %v319
                  %v321 = vld [vmem:[%s307 + $0x30] sm:$0xff]
                  %322 = vst [vmem:[%s308 + $0x90] sm:$0xff] %v321
                  %v323 = vld [vmem:[%s307 + $0x38] sm:$0xff]
                  %324 = vst [vmem:[%s308 + $0x98] sm:$0xff] %v323
                  %s325 = sadd.s32 1, %s306
                  %p326 = scmp.ge.s32.totalorder %s325, %s299
                  %s327 = scalar_select %p326, 0, %s325
                  %s328 = smul.u32 %s327, 32
                  %s329 = smul.u32 %s327, 32
                  %s330 = scalar_lea.vmem %s227, %s328
                  %s331 = scalar_lea.vmem %s215, %s329 [#allocation2]
                $region59: #{tpu_custom_call.1} parent=53 // loop_footer
                  %s303 = sadd.s32 %s301, 1
                $region60: #{tpu_custom_call.1} parent=53 // loop_footer_branch
                  %300 = sbr.rel target = $region56
                $region61: #{tpu_custom_call.1} parent=53 // loop_exit
                  _
                %s332 = sshrl.u32 %s218, 2
                %s333 = sand.u32 %s218, 3
                %s334 = smul.u32 %s332, 4
                %s335 = smul.u32 8, %s334
                %s336 = scalar_lea.vmem %s227, %s335
                %s337 = smul.u32 8, %s334
                %s338 = scalar_lea.vmem %s215, %s337 [#allocation2]
                // While loop
                $region62: #{tpu_custom_call.1} parent=53 // loop_pre_header
                  _
                $region63: #{tpu_custom_call.1} parent=53 // loop_header
                  %s340 = sphi 0, %s342
                  %p341 = scmp.ge.s32.totalorder %s340, %s333
                  %s345 = sphi 0, %s354
                  %s346 = sphi %s336, %s357
                  %s347 = sphi %s338, %s358
                $region64: #{tpu_custom_call.1} parent=53 // loop_header_branch
                  %344 = sbr.rel (%p341) target = $region68
                $region65: #{tpu_custom_call.1} parent=53 // loop_body
                  %v348 = vld [vmem:[%s346] sm:$0xff]
                  %349 = vst [vmem:[%s347] sm:$0xff] %v348
                  %v350 = vld [vmem:[%s346 + $0x20] sm:$0xff]
                  %351 = vst [vmem:[%s347 + $0x80] sm:$0xff] %v350
                  %s352 = sadd.s32 1, %s345
                  %p353 = scmp.ge.s32.totalorder %s352, %s333
                  %s354 = scalar_select %p353, 0, %s352
                  %s355 = smul.u32 %s354, 8
                  %s356 = smul.u32 %s354, 8
                  %s357 = scalar_lea.vmem %s336, %s355
                  %s358 = scalar_lea.vmem %s338, %s356 [#allocation2]
                $region66: #{tpu_custom_call.1} parent=53 // loop_footer
                  %s342 = sadd.s32 %s340, 1
                $region67: #{tpu_custom_call.1} parent=53 // loop_footer_branch
                  %339 = sbr.rel target = $region63
                $region68: #{tpu_custom_call.1} parent=53 // loop_exit
                  _
              $region54: #{tpu_custom_call.1} parent=31 // pred_fallthru
                _
              // Predicated region
              $region69: #{tpu_custom_call.1} parent=31 // pred_check
                _
              $region70: #{tpu_custom_call.1} parent=31 // pred_check_branch
                %360 = sbr.rel target = $region72
              $region71: #{tpu_custom_call.1} parent=31 // pred_region
                _
              $region72: #{tpu_custom_call.1} parent=31 // pred_fallthru
                _
            $region32: #{tpu_custom_call.1} parent=27 // pred_fallthru
              _
            // Predicated region
            $region33: #{tpu_custom_call.1} parent=27 // pred_check
              _
            $region34: #{tpu_custom_call.1} parent=27 // pred_check_branch
              %234 = sbr.rel target = $region36
            $region35: #{tpu_custom_call.1} parent=27 // pred_region
              %s236 = ssub.s32 256, 1
              %s237 = sshrl.u32 %s218, 2
              // While loop
              $region37: #{tpu_custom_call.1} parent=35 // loop_pre_header
                _
              $region38: #{tpu_custom_call.1} parent=35 // loop_header
                %s239 = sphi 0, %s241
                %p240 = scmp.ge.s32.totalorder %s239, %s237
                %s244 = sphi 0, %s265
                %s245 = sphi %s227, %s268
                %s246 = sphi %s215, %s269
              $region39: #{tpu_custom_call.1} parent=35 // loop_header_branch
                %243 = sbr.rel (%p240) target = $region43
              $region40: #{tpu_custom_call.1} parent=35 // loop_body
                %v247 = vld [vmem:[%s245] sm:%s236]
                %248 = vst [vmem:[%s246] sm:%s236] %v247
                %v249 = vld [vmem:[%s245 + $0x8] sm:%s236]
                %250 = vst [vmem:[%s246 + $0x8] sm:%s236] %v249
                %v251 = vld [vmem:[%s245 + $0x10] sm:%s236]
                %252 = vst [vmem:[%s246 + $0x10] sm:%s236] %v251
                %v253 = vld [vmem:[%s245 + $0x18] sm:%s236]
                %254 = vst [vmem:[%s246 + $0x18] sm:%s236] %v253
                %v255 = vld [vmem:[%s245 + $0x20] sm:%s236]
                %256 = vst [vmem:[%s246 + $0x80] sm:%s236] %v255
                %v257 = vld [vmem:[%s245 + $0x28] sm:%s236]
                %258 = vst [vmem:[%s246 + $0x88] sm:%s236] %v257
                %v259 = vld [vmem:[%s245 + $0x30] sm:%s236]
                %260 = vst [vmem:[%s246 + $0x90] sm:%s236] %v259
                %v261 = vld [vmem:[%s245 + $0x38] sm:%s236]
                %262 = vst [vmem:[%s246 + $0x98] sm:%s236] %v261
                %s263 = sadd.s32 1, %s244
                %p264 = scmp.ge.s32.totalorder %s263, %s237
                %s265 = scalar_select %p264, 0, %s263
                %s266 = smul.u32 %s265, 32
                %s267 = smul.u32 %s265, 32
                %s268 = scalar_lea.vmem %s227, %s266
                %s269 = scalar_lea.vmem %s215, %s267 [#allocation2]
              $region41: #{tpu_custom_call.1} parent=35 // loop_footer
                %s241 = sadd.s32 %s239, 1
              $region42: #{tpu_custom_call.1} parent=35 // loop_footer_branch
                %238 = sbr.rel target = $region38
              $region43: #{tpu_custom_call.1} parent=35 // loop_exit
                _
              %s270 = sshrl.u32 %s218, 2
              %s271 = sand.u32 %s218, 3
              %s272 = smul.u32 %s270, 4
              %s273 = smul.u32 8, %s272
              %s274 = scalar_lea.vmem %s227, %s273
              %s275 = smul.u32 8, %s272
              %s276 = scalar_lea.vmem %s215, %s275 [#allocation2]
              // While loop
              $region44: #{tpu_custom_call.1} parent=35 // loop_pre_header
                _
              $region45: #{tpu_custom_call.1} parent=35 // loop_header
                %s278 = sphi 0, %s280
                %p279 = scmp.ge.s32.totalorder %s278, %s271
                %s283 = sphi 0, %s292
                %s284 = sphi %s274, %s295
                %s285 = sphi %s276, %s296
              $region46: #{tpu_custom_call.1} parent=35 // loop_header_branch
                %282 = sbr.rel (%p279) target = $region50
              $region47: #{tpu_custom_call.1} parent=35 // loop_body
                %v286 = vld [vmem:[%s284] sm:%s236]
                %287 = vst [vmem:[%s285] sm:%s236] %v286
                %v288 = vld [vmem:[%s284 + $0x20] sm:%s236]
                %289 = vst [vmem:[%s285 + $0x80] sm:%s236] %v288
                %s290 = sadd.s32 1, %s283
                %p291 = scmp.ge.s32.totalorder %s290, %s271
                %s292 = scalar_select %p291, 0, %s290
                %s293 = smul.u32 %s292, 8
                %s294 = smul.u32 %s292, 8
                %s295 = scalar_lea.vmem %s274, %s293
                %s296 = scalar_lea.vmem %s276, %s294 [#allocation2]
              $region48: #{tpu_custom_call.1} parent=35 // loop_footer
                %s280 = sadd.s32 %s278, 1
              $region49: #{tpu_custom_call.1} parent=35 // loop_footer_branch
                %277 = sbr.rel target = $region45
              $region50: #{tpu_custom_call.1} parent=35 // loop_exit
                _
            $region36: #{tpu_custom_call.1} parent=27 // pred_fallthru
              _
          $region28: #{tpu_custom_call.1} parent=23 // pred_fallthru
            _
          %361 = vnop
        $region24: #{tpu_custom_call.1} parent=15 // pred_fallthru
          _
        // Predicated region
        $region73: #{tpu_custom_call.1} parent=15 // pred_check
          %p362 = pneg %p133
        $region74: #{tpu_custom_call.1} parent=15 // pred_check_branch
          %364 = sbr.rel (%p362) target = $region76
        $region75: #{tpu_custom_call.1} parent=15 // pred_region
          %s365 = smul.u32 2, %s20
          %p366 = scmp.lt.s32.totalorder %s19, 2
          %s367 = scalar_select %p366, %s19, 2
          %p368 = scmp.lt.s32.totalorder %s365, 1
          %s369 = scalar_select %p368, %s365, 1
          %p370 = scmp.lt.s32.totalorder %s21, 0
          %s371 = scalar_select %p370, %s21, 0
          %s372 = sadd.s32 %s371, %s369
          %s373 = smul.addr %s367, 2
          %s374 = sadd.s32 %s372, %s373
          %s375 = scalar_lea.vmem %s2, %s374
          %s376 = smul.u32 2, %s20
        $region76: #{tpu_custom_call.1} parent=15 // pred_fallthru
          _
      $region16: #{tpu_custom_call.1} parent=5 // pred_fallthru
        _
      %p377 = scmp.le.s32.totalorder 1, %s12
      %p378 = scmp.lt.s32.totalorder %s12, 4
      %p379 = pnand %p377, %p378
      %p380 = pneg %p379
      // Predicated region
      $region77: #{tpu_custom_call.1} parent=5 // pred_check
        _
      $region78: #{tpu_custom_call.1} parent=5 // pred_check_branch
        %382 = sbr.rel (%p379) target = $region80
      $region79: #{tpu_custom_call.1} parent=5 // pred_region
        %s383 = ssub.s32 %s12, 1
        %s384 = sand.u32 %s96, 1
        %s385 = sand.u32 %s96, 1
        %s386 = smul.addr %s385, 256
        %s387 = scalar_lea.vmem [#allocation2], %s386
        // Predicated region
        $region81: #{tpu_custom_call.1} parent=79 // pred_check
          %p388 = pneg %p109
        $region82: #{tpu_custom_call.1} parent=79 // pred_check_branch
          %390 = sbr.rel (%p388) target = $region84
        $region83: #{tpu_custom_call.1} parent=79 // pred_region
          _
        $region84: #{tpu_custom_call.1} parent=79 // pred_fallthru
          _
        %s391 = smul.u32 2, %s25
        %p392 = scmp.lt.s32.totalorder %s24, 2
        %s393 = scalar_select %p392, %s24, 2
        %p394 = scmp.lt.s32.totalorder %s391, 1
        %s395 = scalar_select %p394, %s391, 1
        %p396 = scmp.lt.s32.totalorder %s27, 0
        %s397 = scalar_select %p396, %s27, 0
        %p398 = scmp.lt.s32.totalorder %s28, 0
        %s399 = scalar_select %p398, %s28, 0
        %s400 = sadd.s32 %s399, %s397
        %s401 = sadd.s32 %s400, %s395
        %s402 = smul.addr %s393, 2
        %s403 = sadd.s32 %s401, %s402
        %s404 = smul.addr %s403, 8
        %s405 = scalar_lea.vmem %s0, %s404
        %p406 = pneg %p77
        %p407 = pneg %p74
        %s408 = sand.u32 %s96, 1
        %s409 = sand.u32 %s96, 1
        %s410 = smul.addr %s409, 256
        %s411 = scalar_lea.vmem [#allocation2], %s410
        %p412 = pneg %p109
        %p413 = pneg %p106
        %s414 = smul.u32 2, %s25
        %p415 = scmp.lt.s32.totalorder %s24, 2
        %s416 = scalar_select %p415, %s24, 2
        %p417 = scmp.lt.s32.totalorder %s414, 1
        %s418 = scalar_select %p417, %s414, 1
        %p419 = scmp.lt.s32.totalorder %s26, 0
        %s420 = scalar_select %p419, %s26, 0
        %s421 = sadd.s32 %s420, %s418
        %s422 = smul.addr %s416, 2
        %s423 = sadd.s32 %s421, %s422
        %s424 = scalar_lea.vmem %s2, %s423
        %p425 = pneg %p139
        %p426 = pneg %p136
        %p427 = pneg %p171
        %p428 = pneg %p168
        %s429 = sand.u32 %s158, 1
        %s430 = scalar_lea.sflag [#allocation4], %s429
        %s431 = sand.u32 %s158, 1
        %s432 = smul.addr %s431, 16
        %s433 = scalar_lea.vmem [#allocation3], %s432
        %s434 = smul.u32 2, %s25
        %p435 = scmp.lt.s32.totalorder %s24, 2
        %s436 = scalar_select %p435, %s24, 2
        %p437 = scmp.lt.s32.totalorder %s434, 1
        %s438 = scalar_select %p437, %s434, 1
        %p439 = scmp.lt.s32.totalorder %s27, 0
        %s440 = scalar_select %p439, %s27, 0
        %p441 = scmp.lt.s32.totalorder %s28, 0
        %s442 = scalar_select %p441, %s28, 0
        %s443 = sadd.s32 %s442, %s440
        %s444 = sadd.s32 %s443, %s438
        %s445 = smul.addr %s436, 2
        %s446 = sadd.s32 %s444, %s445
        %s447 = smul.addr %s446, 8
        %s448 = scalar_lea.vmem %s0, %s447
        %s449 = smul.u32 2, %s25
        %s450 = smul.u32 2, %s25
        %s451 = smul.u32 16, %s28
        %s452 = ssub.s32 4, %s451
        %s453 = smul.u32 16, %s452
        %s454 = smul.u32 2, %s25
        %p455 = scmp.lt.s32.totalorder %s24, 2
        %s456 = scalar_select %p455, %s24, 2
        %p457 = scmp.lt.s32.totalorder %s454, 1
        %s458 = scalar_select %p457, %s454, 1
        %p459 = scmp.lt.s32.totalorder %s26, 0
        %s460 = scalar_select %p459, %s26, 0
        %s461 = sadd.s32 %s460, %s458
        %s462 = smul.addr %s456, 2
        %s463 = sadd.s32 %s461, %s462
        %s464 = scalar_lea.vmem %s2, %s463
        %s465 = smul.u32 2, %s25
        %s466 = smul.u32 2, %s25
        %v467 = vld [vmem:[%s448] sm:$0xff]
        %v468 = vld [vmem:[%s387] sm:$0xff]
        %v469 = vld [vmem:[%s387 + $0x8] sm:$0xff]
        %v470 = vld [vmem:[%s387 + $0x10] sm:$0xff]
        %v471 = vld [vmem:[%s387 + $0x18] sm:$0xff]
        %v472 = vld [vmem:[%s387 + $0x20] sm:$0xff]
        %v473 = vld [vmem:[%s387 + $0x28] sm:$0xff]
        %v474 = vld [vmem:[%s387 + $0x30] sm:$0xff]
        %v475 = vld [vmem:[%s387 + $0x38] sm:$0xff]
        %v476 = vld [vmem:[%s387 + $0x40] sm:$0xff]
        %v477 = vld [vmem:[%s387 + $0x48] sm:$0xff]
        %v478 = vld [vmem:[%s387 + $0x50] sm:$0xff]
        %v479 = vld [vmem:[%s387 + $0x58] sm:$0xff]
        %v480 = vld [vmem:[%s387 + $0x60] sm:$0xff]
        %v481 = vld [vmem:[%s387 + $0x68] sm:$0xff]
        %v482 = vld [vmem:[%s387 + $0x70] sm:$0xff]
        %v483 = vld [vmem:[%s387 + $0x78] sm:$0xff]
        %v484 = vlaneseq
        %v485 = vand.u32 %v484, 127
        %vm486 = vcmp.lt.s32.totalorder %v485, 32
        %v487 = vlaneseq
        %v488 = vshrl.u32 %v487, 7
        %v489 = vadd.s32 %v488, 8
        %v490 = vadd.s32 %v488, 16
        %v491 = vadd.s32 %v488, 24
        %v492 = vadd.s32 %v488, 32
        %v493 = vadd.s32 %v488, 40
        %v494 = vadd.s32 %v488, 48
        %v495 = vadd.s32 %v488, 56
        %v496 = vadd.s32 %v488, 64
        %v497 = vadd.s32 %v488, 72
        %v498 = vadd.s32 %v488, 80
        %v499 = vadd.s32 %v488, 88
        %v500 = vadd.s32 %v488, 96
        %v501 = vadd.s32 %v488, 104
        %v502 = vadd.s32 %v488, 112
        %v503 = vadd.s32 %v488, 120
        %vm504 = vcmp.lt.s32.totalorder %v488, 32
        %vm505 = vcmp.lt.s32.totalorder %v489, 32
        %vm506 = vcmp.lt.s32.totalorder %v490, 32
        %vm507 = vcmp.lt.s32.totalorder %v491, 32
        %vm508 = vcmp.lt.s32.totalorder %v492, 32
        %vm509 = vcmp.lt.s32.totalorder %v493, 32
        %vm510 = vcmp.lt.s32.totalorder %v494, 32
        %vm511 = vcmp.lt.s32.totalorder %v495, 32
        %vm512 = vcmp.lt.s32.totalorder %v496, 32
        %vm513 = vcmp.lt.s32.totalorder %v497, 32
        %vm514 = vcmp.lt.s32.totalorder %v498, 32
        %vm515 = vcmp.lt.s32.totalorder %v499, 32
        %vm516 = vcmp.lt.s32.totalorder %v500, 32
        %vm517 = vcmp.lt.s32.totalorder %v501, 32
        %vm518 = vcmp.lt.s32.totalorder %v502, 32
        %vm519 = vcmp.lt.s32.totalorder %v503, 32
        %v520 = vsel %vm486, %v467, 0.0
        %v521 = vsel %vm504, %v468, 0.0
        %v522 = vsel %vm505, %v469, 0.0
        %v523 = vsel %vm506, %v470, 0.0
        %v524 = vsel %vm507, %v471, 0.0
        %v525 = vsel %vm508, %v472, 0.0
        %v526 = vsel %vm509, %v473, 0.0
        %v527 = vsel %vm510, %v474, 0.0
        %v528 = vsel %vm511, %v475, 0.0
        %v529 = vsel %vm512, %v476, 0.0
        %v530 = vsel %vm513, %v477, 0.0
        %v531 = vsel %vm514, %v478, 0.0
        %v532 = vsel %vm515, %v479, 0.0
        %v533 = vsel %vm516, %v480, 0.0
        %v534 = vsel %vm517, %v481, 0.0
        %v535 = vsel %vm518, %v482, 0.0
        %v536 = vsel %vm519, %v483, 0.0
        %v537 = vld [vmem:[%s464] sm:$0x1]
        %v539 = vperm.slane %v537, 0
        %541 = vmatpush.msra.mxu0 %v536
        %542 = vmatpush.msra.mxu0 %v535
        %543 = vmatpush.msra.mxu0 %v534
        %544 = vmatpush.msra.mxu0 %v533
        %545 = vmatpush.msra.mxu0 %v532
        %546 = vmatpush.msra.mxu0 %v531
        %547 = vmatpush.msra.mxu0 %v530
        %548 = vmatpush.msra.mxu0 %v529
        %549 = vmatpush.msra.mxu0 %v528
        %550 = vmatpush.msra.mxu0 %v527
        %551 = vmatpush.msra.mxu0 %v526
        %552 = vmatpush.msra.mxu0 %v525
        %553 = vmatpush.msra.mxu0 %v524
        %554 = vmatpush.msra.mxu0 %v523
        %555 = vmatpush.msra.mxu0 %v522
        %556 = vmatpush.msra.mxu0 %v521
        %557 = vmatmul.f32.gmra.mxu0 %v520
        %v558 = vpop.f32.mrf.mxu0
        %v559 = vadd.f32 %v539, %v558
        %560 = vdwg.mxu0
        %561 = vst [vmem:[%s433] sm:$0xff] %v559
        %s562 = scalar_lea.vmem %s448, 8
        %v563 = vld [vmem:[%s562] sm:$0xff]
        %s564 = scalar_lea.vmem %s387, 128 [#allocation2]
        %v565 = vld [vmem:[%s564] sm:$0xff]
        %v566 = vld [vmem:[%s564 + $0x8] sm:$0xff]
        %v567 = vld [vmem:[%s564 + $0x10] sm:$0xff]
        %v568 = vld [vmem:[%s564 + $0x18] sm:$0xff]
        %v569 = vld [vmem:[%s564 + $0x20] sm:$0xff]
        %v570 = vld [vmem:[%s564 + $0x28] sm:$0xff]
        %v571 = vld [vmem:[%s564 + $0x30] sm:$0xff]
        %v572 = vld [vmem:[%s564 + $0x38] sm:$0xff]
        %v573 = vld [vmem:[%s564 + $0x40] sm:$0xff]
        %v574 = vld [vmem:[%s564 + $0x48] sm:$0xff]
        %v575 = vld [vmem:[%s564 + $0x50] sm:$0xff]
        %v576 = vld [vmem:[%s564 + $0x58] sm:$0xff]
        %v577 = vld [vmem:[%s564 + $0x60] sm:$0xff]
        %v578 = vld [vmem:[%s564 + $0x68] sm:$0xff]
        %v579 = vld [vmem:[%s564 + $0x70] sm:$0xff]
        %v580 = vld [vmem:[%s564 + $0x78] sm:$0xff]
        %v581 = vsel %vm486, %v563, 0.0
        %v582 = vsel %vm504, %v565, 0.0
        %v583 = vsel %vm505, %v566, 0.0
        %v584 = vsel %vm506, %v567, 0.0
        %v585 = vsel %vm507, %v568, 0.0
        %v586 = vsel %vm508, %v569, 0.0
        %v587 = vsel %vm509, %v570, 0.0
        %v588 = vsel %vm510, %v571, 0.0
        %v589 = vsel %vm511, %v572, 0.0
        %v590 = vsel %vm512, %v573, 0.0
        %v591 = vsel %vm513, %v574, 0.0
        %v592 = vsel %vm514, %v575, 0.0
        %v593 = vsel %vm515, %v576, 0.0
        %v594 = vsel %vm516, %v577, 0.0
        %v595 = vsel %vm517, %v578, 0.0
        %v596 = vsel %vm518, %v579, 0.0
        %v597 = vsel %vm519, %v580, 0.0
        %s598 = scalar_lea.vmem %s464, 1
        %v599 = vld [vmem:[%s598] sm:$0x1]
        %v601 = vperm.slane %v599, 0
        %603 = vmatpush.msra.mxu0 %v597
        %604 = vmatpush.msra.mxu0 %v596
        %605 = vmatpush.msra.mxu0 %v595
        %606 = vmatpush.msra.mxu0 %v594
        %607 = vmatpush.msra.mxu0 %v593
        %608 = vmatpush.msra.mxu0 %v592
        %609 = vmatpush.msra.mxu0 %v591
        %610 = vmatpush.msra.mxu0 %v590
        %611 = vmatpush.msra.mxu0 %v589
        %612 = vmatpush.msra.mxu0 %v588
        %613 = vmatpush.msra.mxu0 %v587
        %614 = vmatpush.msra.mxu0 %v586
        %615 = vmatpush.msra.mxu0 %v585
        %616 = vmatpush.msra.mxu0 %v584
        %617 = vmatpush.msra.mxu0 %v583
        %618 = vmatpush.msra.mxu0 %v582
        %619 = vmatmul.f32.gmra.mxu0 %v581
        %v620 = vpop.f32.mrf.mxu0
        %v621 = vadd.f32 %v601, %v620
        %622 = vdwg.mxu0
        %s623 = scalar_lea.vmem %s433, 8 [#allocation3]
        %624 = vst [vmem:[%s623] sm:$0xff] %v621
        %s625 = sand.u32 %s158, 1
        %s626 = scalar_lea.sflag [#allocation4], %s625
        %s627 = sand.u32 %s158, 1
        %s628 = smul.addr %s627, 16
        %s629 = scalar_lea.vmem [#allocation3], %s628
        // Predicated region
        $region85: #{tpu_custom_call.1} parent=79 // pred_check
          %p630 = pneg %p168
        $region86: #{tpu_custom_call.1} parent=79 // pred_check_branch
          %632 = sbr.rel (%p630) target = $region88
        $region87: #{tpu_custom_call.1} parent=79 // pred_region
          %s633 = smul.u32 2, %s25
          %635 = vsyncadd %s626, 0
          %s636 = sadd.s32 %s26, %s27
          %s637 = sadd.s32 %s636, %s633
          %s638 = smul.addr %s24, 2
          %s639 = sadd.s32 %s637, %s638
          %s640 = smul.addr %s639, 8
          %s641 = scalar_lea.hbm %s3, %s640
          %s642 = sshll.u32 %s629, 4
          %s643 = int_to_ptr.vmem [resolvable:$true] %s642
          %s644 = sshll.u32 %s641, 4
          %s645 = int_to_ptr.hbm [resolvable:$true] %s644
          %650 = dma.vmem_to_hbm [thread:$0]  %s643, 256, %s645, %s626, 128, 128, 8
        $region88: #{tpu_custom_call.1} parent=79 // pred_fallthru
          _
      $region80: #{tpu_custom_call.1} parent=5 // pred_fallthru
        _
      %p651 = scmp.le.s32.totalorder 2, %s12
      // Predicated region
      $region89: #{tpu_custom_call.1} parent=5 // pred_check
        %p652 = pneg %p651
      $region90: #{tpu_custom_call.1} parent=5 // pred_check_branch
        %654 = sbr.rel (%p652) target = $region92
      $region91: #{tpu_custom_call.1} parent=5 // pred_region
        %s655 = ssub.s32 %s12, 2
        // Predicated region
        $region93: #{tpu_custom_call.1} parent=91 // pred_check
          %p656 = pneg %p174
        $region94: #{tpu_custom_call.1} parent=91 // pred_check_branch
          %658 = sbr.rel (%p656) target = $region96
        $region95: #{tpu_custom_call.1} parent=91 // pred_region
          %s659 = sand.u32 %s159, 1
          %s660 = scalar_lea.sflag [#allocation4], %s659
          %s661 = sand.u32 %s159, 1
          %s662 = smul.addr %s661, 16
          %s663 = scalar_lea.vmem [#allocation3], %s662
          %665 = dma.done %s660, 256
        $region96: #{tpu_custom_call.1} parent=91 // pred_fallthru
          _
      $region92: #{tpu_custom_call.1} parent=5 // pred_fallthru
        _
    $region6: #{tpu_custom_call.1} parent=1 // loop_footer
      %s16 = sadd.s32 1, %s12
    $region7: #{tpu_custom_call.1} parent=1 // loop_footer_branch
      %11 = sbr.rel target = $region3
    $region8: #{tpu_custom_call.1} parent=1 // loop_exit
      _
    %666 = vsyncpa [#allocation4], 1
    %s667 = scalar_lea.sflag [#allocation4], 1
    %668 = vsyncpa %s667, 1

</llo_original>
